<compile_context>
chip_gen: v6e
topology: v6e:2x2x1
jax: 0.10.0
libtpu: 0.0.40
codegen_flags: <defaults>
</compile_context>

<pallas_src>
import jax
import jax.numpy as jnp
from jax.experimental import pallas as pl
from jax.experimental.pallas import tpu as pltpu


def _ln_kernel(x_ref, gamma_ref, beta_ref, sel_ref, selt_ref, tilet_ref, o_ref):
    # Block shapes:
    #   x_ref, o_ref       : (1, C, L)  with L = TH*N (lane-dense flat (H, N) view)
    #   gamma_ref/beta_ref : (1, C, N)
    #   sel_ref            : (L, TH)   sel[j, h]   = 1.0 iff j // N == h  (lanes -> rows)
    #   selt_ref           : (TH, L)   selt[h, j]  = 1.0 iff j // N == h  (rows -> lanes)
    #   tilet_ref          : (N, L)    tilet[n, j] = 1.0 iff j %  N == n  ((C,N) -> (C,L))
    C = x_ref.shape[1]
    N = gamma_ref.shape[2]
    n_red = C * N
    denom = max(n_red - 1, 1)            # unbiased (ddof=1); guard C*N == 1

    sel = sel_ref[...]
    selt = selt_ref[...]
    tilet = tilet_ref[...]

    # ---- pass 1: per-H-row mean -------------------------------------------
    x = x_ref[0].astype(jnp.float32)                        # (C, L)
    csum = jnp.sum(x, axis=0, keepdims=True)                # (1, L)  sum over C
    row_sum = jnp.dot(csum, sel,
                      preferred_element_type=jnp.float32)   # (1, TH) sum over N
    mean = jnp.dot(row_sum * (1.0 / n_red), selt,
                   preferred_element_type=jnp.float32)      # (1, L)  per-lane mean

    # ---- pass 2: per-H-row unbiased std ------------------------------------
    d = x - mean                                            # (C, L)
    ssq = jnp.dot(jnp.sum(d * d, axis=0, keepdims=True), sel,
                  preferred_element_type=jnp.float32)       # (1, TH)
    std_row = jnp.sqrt(ssq * (1.0 / denom))                 # (1, TH)
    inv_row = 1.0 / (std_row + 1e-6)                        # exact divide (review)
    inv = jnp.dot(inv_row, selt,
                  preferred_element_type=jnp.float32)       # (1, L)

    # ---- affine params tiled to the flat layout (tiny MXU matmuls) ----------
    g = jnp.dot(gamma_ref[0].astype(jnp.float32), tilet,
                preferred_element_type=jnp.float32)         # (C, L)
    b = jnp.dot(beta_ref[0].astype(jnp.float32), tilet,
                preferred_element_type=jnp.float32)         # (C, L)

    # ---- apply: re-read x (cheap VMEM loads) so the big f32 temps (x, d)
    #      are not kept live across the reductions (review: live-range trim).
    x2 = x_ref[0].astype(jnp.float32)
    o_ref[0] = ((x2 - mean) * (g * inv) + b).astype(o_ref.dtype)


def _pick_th(B, H, N, C,
             f32_block_bytes=2 << 20,   # per-block f32 working set (v7x-safe)
             sel_bytes=2 << 20):        # budget for resident sel + selT matrices
    """Largest TH | H with (TH*N) % 128 == 0 under the VMEM budgets,
    preferring a grid with an even number (>= 2) of steps (v7x 2-TC balance)."""
    valid = []
    for th in range(1, H + 1):
        if H % th:
            continue
        if (th * N) % 128:
            continue
        if C * th * N * 4 > f32_block_bytes:
            continue
        if 2 * th * th * N * 4 > sel_bytes:
            continue
        valid.append(th)
    if not valid:
        # No lane-aligned divisor of H: fall back to one full-H block per batch
        # (always a legal block shape; stores may be partially masked).
        # TODO(synk): for very large C*H*N this single block could exceed the
        # scoped VMEM limit; switch to padded partial H-blocks if that bites.
        return H

    def steps(th):
        return B * (H // th)

    even = [th for th in valid if steps(th) >= 2 and steps(th) % 2 == 0]
    return max(even) if even else max(valid)


def ln_forward(x, gamma, beta):
    """x: [B, C, H, N] (NCHW-style); gamma/beta: [1, C, 1, N]."""
    B, C, H, N = x.shape
    TH = _pick_th(B, H, N, C)
    HT = H // TH
    L = TH * N                     # lanes per block (multiple of 128 when possible)

    # Free reshapes: H and N are contiguous, so [B, C, H, N] <-> [B, C, H*N]
    # costs nothing and makes every block lane-dense (review: biggest lever).
    x_flat = x.reshape(B, C, H * N)
    gamma2 = gamma.reshape(1, C, N)
    beta2 = beta.reshape(1, C, N)

    # 0/1 selector matrices, built once by XLA and VMEM-resident in the kernel.
    grp = jnp.arange(L, dtype=jnp.int32) // N              # H row per flat lane
    pos = jnp.arange(L, dtype=jnp.int32) % N               # position-in-row per lane
    rows = jnp.arange(TH, dtype=jnp.int32)
    cols = jnp.arange(N, dtype=jnp.int32)
    sel = (grp[:, None] == rows[None, :]).astype(jnp.float32)     # (L, TH)
    selt = (rows[:, None] == grp[None, :]).astype(jnp.float32)    # (TH, L)
    tilet = (cols[:, None] == pos[None, :]).astype(jnp.float32)   # (N, L)

    out_flat = pl.pallas_call(
        _ln_kernel,
        out_shape=jax.ShapeDtypeStruct((B, C, H * N), x.dtype),
        grid_spec=pltpu.PrefetchScalarGridSpec(
            num_scalar_prefetch=0,
            grid=(B, HT),
            in_specs=[
                pl.BlockSpec((1, C, L), lambda bi, hi: (bi, 0, hi)),
                pl.BlockSpec((1, C, N), lambda bi, hi: (0, 0, 0)),
                pl.BlockSpec((1, C, N), lambda bi, hi: (0, 0, 0)),
                pl.BlockSpec((L, TH), lambda bi, hi: (0, 0)),
                pl.BlockSpec((TH, L), lambda bi, hi: (0, 0)),
                pl.BlockSpec((N, L), lambda bi, hi: (0, 0)),
            ],
            out_specs=pl.BlockSpec((1, C, L), lambda bi, hi: (bi, 0, hi)),
        ),
        compiler_params=pltpu.CompilerParams(
            dimension_semantics=("parallel", "parallel"),
            # v5e's default scoped VMEM is 16 MiB; 32 MiB covers the double-
            # buffered blocks + resident selectors + f32 temporaries and is
            # safe on every generation (v7x physical VMEM is 64 MiB).
            vmem_limit_bytes=32 * 1024 * 1024,
        ),
    )(x_flat, gamma2, beta2, sel, selt, tilet)

    return out_flat.reshape(B, C, H, N)


def _reference(x, gamma, beta):
    mean = jnp.mean(x, axis=(1, 3), keepdims=True)
    n = x.shape[1] * x.shape[3]
    var = jnp.sum((x - mean) ** 2, axis=(1, 3), keepdims=True) / (n - 1)
    std = jnp.sqrt(var)
    return (x - mean) / (std + 1e-6) * gamma + beta


if __name__ == "__main__":
    B, C, H, N = 2, 4, 16, 16

    key = jax.random.PRNGKey(0)
    kx, kg, kb = jax.random.split(key, 3)
    x = jax.random.normal(kx, (B, C, H, N), dtype=jnp.float32)
    # non-trivial gamma/beta to exercise the broadcast (init would be ones/zeros)
    gamma = jax.random.normal(kg, (1, C, 1, N), dtype=jnp.float32)
    beta = jax.random.normal(kb, (1, C, 1, N), dtype=jnp.float32)

    out = jax.block_until_ready(ln_forward(x, gamma, beta))
    ref = _reference(x, gamma, beta)

    assert out.shape == x.shape
    # Exact divide now (no approx reciprocal); remaining deltas are f32
    # reduction-order / MXU-accumulation differences only.
    assert jnp.allclose(out, ref, atol=2e-4, rtol=2e-4), "mismatch vs reference"

    print("KERNEL_OK")
</pallas_src>

<mosaic_0001>
module attributes {stable_mosaic.version = 11 : i64} {
  func.func @_ln_kernel(%arg0: i32, %arg1: i32, %arg2: memref<1x4x256xf32, #tpu.memory_space<vmem>>, %arg3: memref<1x4x16xf32, #tpu.memory_space<vmem>>, %arg4: memref<1x4x16xf32, #tpu.memory_space<vmem>>, %arg5: memref<256x16xf32, #tpu.memory_space<vmem>>, %arg6: memref<16x256xf32, #tpu.memory_space<vmem>>, %arg7: memref<16x256xf32, #tpu.memory_space<vmem>>, %arg8: memref<1x4x256xf32, #tpu.memory_space<vmem>>) attributes {dimension_semantics = [#tpu.dimension_semantics<parallel>, #tpu.dimension_semantics<parallel>], iteration_bounds = array<i64: 2, 1>, scalar_prefetch = 0 : i64, scratch_operands = 0 : i64, tpu.core_type = #tpu.core_type<tc>, window_params = [{transform_indices = @transform_0, window_bounds = array<i64: 1, 4, 256>}, {pipeline_mode = #tpu.pipeline_mode<synchronous>, transform_indices = @transform_1, window_bounds = array<i64: 1, 4, 16>}, {pipeline_mode = #tpu.pipeline_mode<synchronous>, transform_indices = @transform_2, window_bounds = array<i64: 1, 4, 16>}, {pipeline_mode = #tpu.pipeline_mode<synchronous>, transform_indices = @transform_3, window_bounds = array<i64: 256, 16>}, {pipeline_mode = #tpu.pipeline_mode<synchronous>, transform_indices = @transform_4, window_bounds = array<i64: 16, 256>}, {pipeline_mode = #tpu.pipeline_mode<synchronous>, transform_indices = @transform_5, window_bounds = array<i64: 16, 256>}, {transform_indices = @transform_6, window_bounds = array<i64: 1, 4, 256>}]} {
    %c0 = arith.constant 0 : index
    %c0_0 = arith.constant 0 : index
    %0 = vector.load %arg5[%c0, %c0_0] : memref<256x16xf32, #tpu.memory_space<vmem>>, vector<256x16xf32>
    %c0_1 = arith.constant 0 : index
    %c0_2 = arith.constant 0 : index
    %1 = vector.load %arg6[%c0_1, %c0_2] : memref<16x256xf32, #tpu.memory_space<vmem>>, vector<16x256xf32>
    %c0_3 = arith.constant 0 : index
    %c0_4 = arith.constant 0 : index
    %2 = vector.load %arg7[%c0_3, %c0_4] : memref<16x256xf32, #tpu.memory_space<vmem>>, vector<16x256xf32>
    %c0_5 = arith.constant 0 : index
    %c0_6 = arith.constant 0 : index
    %c0_7 = arith.constant 0 : index
    %3 = vector.load %arg2[%c0_5, %c0_6, %c0_7] : memref<1x4x256xf32, #tpu.memory_space<vmem>>, vector<1x4x256xf32>
    %4 = vector.shape_cast %3 : vector<1x4x256xf32> to vector<4x256xf32>
    %cst = arith.constant dense<0.000000e+00> : vector<256xf32>
    %5 = vector.multi_reduction <add>, %4, %cst [0] : vector<4x256xf32> to vector<256xf32>
    %6 = vector.shape_cast %5 : vector<256xf32> to vector<1x256xf32>
    %cst_8 = arith.constant dense<0.000000e+00> : vector<1x16xf32>
    %7 = tpu.matmul %6, %0, %cst_8 {dimension_numbers = #tpu.dot_dimension_numbers<[1], [0], [0], [1], [0, 0, 1, 1], [], []>} : vector<1x256xf32>, vector<256x16xf32>, vector<1x16xf32> -> vector<1x16xf32>
    %cst_9 = arith.constant 1.562500e-02 : f32
    %8 = vector.broadcast %cst_9 : f32 to vector<1x16xf32>
    %9 = arith.mulf %7, %8 : vector<1x16xf32>
    %cst_10 = arith.constant dense<0.000000e+00> : vector<1x256xf32>
    %10 = tpu.matmul %9, %1, %cst_10 {dimension_numbers = #tpu.dot_dimension_numbers<[1], [0], [0], [1], [0, 0, 1, 1], [], []>} : vector<1x16xf32>, vector<16x256xf32>, vector<1x256xf32> -> vector<1x256xf32>
    %11 = vector.broadcast %10 : vector<1x256xf32> to vector<4x256xf32>
    %12 = arith.subf %4, %11 : vector<4x256xf32>
    %13 = arith.mulf %12, %12 : vector<4x256xf32>
    %cst_11 = arith.constant dense<0.000000e+00> : vector<256xf32>
    %14 = vector.multi_reduction <add>, %13, %cst_11 [0] : vector<4x256xf32> to vector<256xf32>
    %15 = vector.shape_cast %14 : vector<256xf32> to vector<1x256xf32>
    %cst_12 = arith.constant dense<0.000000e+00> : vector<1x16xf32>
    %16 = tpu.matmul %15, %0, %cst_12 {dimension_numbers = #tpu.dot_dimension_numbers<[1], [0], [0], [1], [0, 0, 1, 1], [], []>} : vector<1x256xf32>, vector<256x16xf32>, vector<1x16xf32> -> vector<1x16xf32>
    %cst_13 = arith.constant 0.0158730168 : f32
    %17 = vector.broadcast %cst_13 : f32 to vector<1x16xf32>
    %18 = arith.mulf %16, %17 : vector<1x16xf32>
    %19 = math.sqrt %18 : vector<1x16xf32>
    %cst_14 = arith.constant 9.99999997E-7 : f32
    %20 = vector.broadcast %cst_14 : f32 to vector<1x16xf32>
    %21 = arith.addf %19, %20 : vector<1x16xf32>
    %cst_15 = arith.constant 1.000000e+00 : f32
    %22 = vector.broadcast %cst_15 : f32 to vector<1x16xf32>
    %23 = arith.divf %22, %21 : vector<1x16xf32>
    %cst_16 = arith.constant dense<0.000000e+00> : vector<1x256xf32>
    %24 = tpu.matmul %23, %1, %cst_16 {dimension_numbers = #tpu.dot_dimension_numbers<[1], [0], [0], [1], [0, 0, 1, 1], [], []>} : vector<1x16xf32>, vector<16x256xf32>, vector<1x256xf32> -> vector<1x256xf32>
    %c0_17 = arith.constant 0 : index
    %c0_18 = arith.constant 0 : index
    %c0_19 = arith.constant 0 : index
    %25 = vector.load %arg3[%c0_17, %c0_18, %c0_19] : memref<1x4x16xf32, #tpu.memory_space<vmem>>, vector<1x4x16xf32>
    %26 = vector.shape_cast %25 : vector<1x4x16xf32> to vector<4x16xf32>
    %cst_20 = arith.constant dense<0.000000e+00> : vector<4x256xf32>
    %27 = tpu.matmul %26, %2, %cst_20 {dimension_numbers = #tpu.dot_dimension_numbers<[1], [0], [0], [1], [0, 0, 1, 1], [], []>} : vector<4x16xf32>, vector<16x256xf32>, vector<4x256xf32> -> vector<4x256xf32>
    %c0_21 = arith.constant 0 : index
    %c0_22 = arith.constant 0 : index
    %c0_23 = arith.constant 0 : index
    %28 = vector.load %arg4[%c0_21, %c0_22, %c0_23] : memref<1x4x16xf32, #tpu.memory_space<vmem>>, vector<1x4x16xf32>
    %29 = vector.shape_cast %28 : vector<1x4x16xf32> to vector<4x16xf32>
    %cst_24 = arith.constant dense<0.000000e+00> : vector<4x256xf32>
    %30 = tpu.matmul %29, %2, %cst_24 {dimension_numbers = #tpu.dot_dimension_numbers<[1], [0], [0], [1], [0, 0, 1, 1], [], []>} : vector<4x16xf32>, vector<16x256xf32>, vector<4x256xf32> -> vector<4x256xf32>
    %c0_25 = arith.constant 0 : index
    %c0_26 = arith.constant 0 : index
    %c0_27 = arith.constant 0 : index
    %31 = vector.load %arg2[%c0_25, %c0_26, %c0_27] : memref<1x4x256xf32, #tpu.memory_space<vmem>>, vector<1x4x256xf32>
    %32 = vector.shape_cast %31 : vector<1x4x256xf32> to vector<4x256xf32>
    %33 = vector.broadcast %10 : vector<1x256xf32> to vector<4x256xf32>
    %34 = arith.subf %32, %33 : vector<4x256xf32>
    %35 = vector.broadcast %24 : vector<1x256xf32> to vector<4x256xf32>
    %36 = arith.mulf %27, %35 : vector<4x256xf32>
    %37 = arith.mulf %34, %36 : vector<4x256xf32>
    %38 = arith.addf %37, %30 : vector<4x256xf32>
    %c0_28 = arith.constant 0 : index
    %c0_29 = arith.constant 0 : index
    %c0_30 = arith.constant 0 : index
    %39 = vector.load %arg8[%c0_28, %c0_29, %c0_30] : memref<1x4x256xf32, #tpu.memory_space<vmem>>, vector<1x4x256xf32>
    %40 = vector.shape_cast %39 : vector<1x4x256xf32> to vector<4x256xf32>
    %41 = vector.shape_cast %38 : vector<4x256xf32> to vector<1x4x256xf32>
    tpu.vector_store %arg8[%c0_28, %c0_29, %c0_30], %41 {strides = array<i32>} : memref<1x4x256xf32, #tpu.memory_space<vmem>>, vector<1x4x256xf32>,
    return
  }
  func.func @transform_0(%arg0: i32, %arg1: i32) -> (i32, i32, i32) {
    %c0_i32 = arith.constant 0 : i32
    %c0_i32_0 = arith.constant 0 : i32
    return %arg0, %c0_i32, %arg1 : i32, i32, i32
  }
  func.func @transform_1(%arg0: i32, %arg1: i32) -> (i32, i32, i32) {
    %c0_i32 = arith.constant 0 : i32
    %c0_i32_0 = arith.constant 0 : i32
    %c0_i32_1 = arith.constant 0 : i32
    %c0_i32_2 = arith.constant 0 : i32
    return %c0_i32, %c0_i32_0, %c0_i32_1 : i32, i32, i32
  }
  func.func @transform_2(%arg0: i32, %arg1: i32) -> (i32, i32, i32) {
    %c0_i32 = arith.constant 0 : i32
    %c0_i32_0 = arith.constant 0 : i32
    %c0_i32_1 = arith.constant 0 : i32
    %c0_i32_2 = arith.constant 0 : i32
    return %c0_i32, %c0_i32_0, %c0_i32_1 : i32, i32, i32
  }
  func.func @transform_3(%arg0: i32, %arg1: i32) -> (i32, i32) {
    %c0_i32 = arith.constant 0 : i32
    %c0_i32_0 = arith.constant 0 : i32
    %c0_i32_1 = arith.constant 0 : i32
    return %c0_i32, %c0_i32_0 : i32, i32
  }
  func.func @transform_4(%arg0: i32, %arg1: i32) -> (i32, i32) {
    %c0_i32 = arith.constant 0 : i32
    %c0_i32_0 = arith.constant 0 : i32
    %c0_i32_1 = arith.constant 0 : i32
    return %c0_i32, %c0_i32_0 : i32, i32
  }
  func.func @transform_5(%arg0: i32, %arg1: i32) -> (i32, i32) {
    %c0_i32 = arith.constant 0 : i32
    %c0_i32_0 = arith.constant 0 : i32
    %c0_i32_1 = arith.constant 0 : i32
    return %c0_i32, %c0_i32_0 : i32, i32
  }
  func.func @transform_6(%arg0: i32, %arg1: i32) -> (i32, i32, i32) {
    %c0_i32 = arith.constant 0 : i32
    %c0_i32_0 = arith.constant 0 : i32
    return %arg0, %c0_i32, %arg1 : i32, i32, i32
  }
}

</mosaic_0001>

<llo_original>
// kernel: tpu_custom_call.1
$region0: #{tpu_custom_call.1}
  #allocation0 [shape = 'u32[]', space=smem, size = 0x4, offset = 0x4, fixed_abs, tag = 'smem constant byte address 0x4 - core index']
  #allocation1 [shape = 'u32[144,128]{1,0:T(1,128)}', space=vmem, size = 0x12000, scoped, tag = 'internal scratch']
  %s0 = inlined_call_operand.vmem [shape: f32[2,4,256], index: 0, kind: input, shape index: {}]
  %s1 = inlined_call_operand.vmem [shape: f32[1,4,16], index: 1, kind: input, shape index: {}]
  %s2 = inlined_call_operand.vmem [shape: f32[1,4,16], index: 2, kind: input, shape index: {}]
  %s3 = inlined_call_operand.vmem [shape: f32[256,16], index: 3, kind: input, shape index: {}]
  %s4 = inlined_call_operand.vmem [shape: f32[16,256], index: 4, kind: input, shape index: {}]
  %s5 = inlined_call_operand.vmem [shape: f32[16,256], index: 5, kind: input, shape index: {}]
  %s6 = inlined_call_operand.hbm [shape: f32[2,4,256], index: 6, kind: output, shape index: {}]
  %s7 = sld [smem:[#allocation0]]
  $region57: #{tpu_custom_call.1} parent=0
    _
  %s9 = ssub.s32 1, %s7
  %s10 = scalar_select 0, %s9, %s7
  $region1: #{tpu_custom_call.1} parent=0
    #allocation2 [shape = 'u8[8192]{0}', space=vmem, size = 0x2000, scoped, tag = 'output window, operand 0']
    #allocation3 [shape = 's32[2]{0}', space=sflag, size = 0x8, scoped, tag = 'scoped memory for tpu_custom_call.1']
    %11 = vsyncpa [#allocation3], 0
    %s12 = scalar_lea.sflag [#allocation3], 1
    %13 = vsyncpa %s12, 0
    loop: start=0, step=1, limit=4
    $region2: #{tpu_custom_call.1} parent=1 // loop_pre_header
      _
    $region3: #{tpu_custom_call.1} parent=1 // loop_header
      %s15 = sphi 0, %s19
      %p16 = scmp.ge.s32.totalorder %s15, 4
      %s22 = sphi 0, %s34
      %s23 = sphi 0, %s30
      %s24 = sphi 0, %s22
      %s25 = sphi 0, %s23
      %s26 = sphi 0, %s24
      %s27 = sphi 0, %s25
      %s39 = sphi 0, %s41
      %s42 = sphi 0, %s39
      %s43 = sphi 0, %s42
      %s59 = sphi 0, %s43
      %s63 = sphi 0, %s63
      %s65 = sphi 0, %s63
      %s66 = sphi 0, %s65
      %s80 = sphi 0, %s66
      %s84 = sphi 0, %s84
      %s86 = sphi 0, %s84
      %s87 = sphi 0, %s86
      %s101 = sphi 0, %s87
      %s105 = sphi 0, %s105
      %s107 = sphi 0, %s105
      %s108 = sphi 0, %s107
      %s122 = sphi 0, %s108
      %s126 = sphi 0, %s126
      %s128 = sphi 0, %s126
      %s129 = sphi 0, %s128
      %s143 = sphi 0, %s129
      %s147 = sphi 0, %s147
      %s149 = sphi 0, %s147
      %s150 = sphi 0, %s149
      %s164 = sphi 0, %s150
      %s172 = sphi 0, %s174
      %s175 = sphi 0, %s172
      %s176 = sphi 0, %s175
      %s192 = sphi 0, %s176
    $region4: #{tpu_custom_call.1} parent=1 // loop_header_branch
      %18 = sbr.rel (%p16) target = $region8
    $region5: #{tpu_custom_call.1} parent=1 // loop_body
      %s20 = ssub.s32 %s15, 1
      %s21 = ssub.s32 %s15, 2
      %s28 = sadd.s32 1, %s23
      %p29 = scmp.ge.s32.totalorder %s28, 1
      %s30 = scalar_select %p29, 0, %s28
      %s31 = sadd.s32 1, %s22
      %s32 = scalar_select %p29, %s31, %s22
      %p33 = scmp.ge.s32.totalorder %s32, 2
      %s34 = scalar_select %p33, 0, %s32
      %s35 = ssub.s32 %s22, %s34
      %s36 = ssub.s32 %s23, %s30
      %s37 = sor.u32 %s35, %s36
      %p38 = scmp.eq.s32.totalorder %s37, 0
      %s40 = sadd.s32 %s39, 1
      %s41 = scalar_select %p38, %s39, %s40
      %p44 = pneg %p38
      %p45 = scmp.eq.s32.totalorder %s15, 1
      %p46 = por %p44, %p45
      %p47 = scmp.ne.s32.totalorder %s39, %s42
      %p48 = scmp.eq.s32.totalorder %s15, 0
      %p49 = por %p47, %p48
      %p50 = scmp.ne.s32.totalorder %s39, %s42
      %p51 = scmp.eq.s32.totalorder %s20, 1
      %p52 = por %p50, %p51
      %p53 = scmp.ne.s32.totalorder %s42, %s43
      %p54 = scmp.eq.s32.totalorder %s20, 0
      %p55 = por %p53, %p54
      %p56 = scmp.ne.s32.totalorder %s42, %s43
      %p57 = scmp.eq.s32.totalorder %s21, 1
      %p58 = por %p56, %p57
      %p60 = scmp.ne.s32.totalorder %s43, %s59
      %p61 = scmp.eq.s32.totalorder %s21, 0
      %p62 = por %p60, %p61
      %s64 = sadd.s32 %s63, 1
      %p67 = scmp.eq.s32.totalorder %s15, 1
      %p68 = scmp.ne.s32.totalorder %s63, %s65
      %p69 = scmp.eq.s32.totalorder %s15, 0
      %p70 = por %p68, %p69
      %p71 = scmp.ne.s32.totalorder %s63, %s65
      %p72 = scmp.eq.s32.totalorder %s20, 1
      %p73 = por %p71, %p72
      %p74 = scmp.ne.s32.totalorder %s65, %s66
      %p75 = scmp.eq.s32.totalorder %s20, 0
      %p76 = por %p74, %p75
      %p77 = scmp.ne.s32.totalorder %s65, %s66
      %p78 = scmp.eq.s32.totalorder %s21, 1
      %p79 = por %p77, %p78
      %p81 = scmp.ne.s32.totalorder %s66, %s80
      %p82 = scmp.eq.s32.totalorder %s21, 0
      %p83 = por %p81, %p82
      %s85 = sadd.s32 %s84, 1
      %p88 = scmp.eq.s32.totalorder %s15, 1
      %p89 = scmp.ne.s32.totalorder %s84, %s86
      %p90 = scmp.eq.s32.totalorder %s15, 0
      %p91 = por %p89, %p90
      %p92 = scmp.ne.s32.totalorder %s84, %s86
      %p93 = scmp.eq.s32.totalorder %s20, 1
      %p94 = por %p92, %p93
      %p95 = scmp.ne.s32.totalorder %s86, %s87
      %p96 = scmp.eq.s32.totalorder %s20, 0
      %p97 = por %p95, %p96
      %p98 = scmp.ne.s32.totalorder %s86, %s87
      %p99 = scmp.eq.s32.totalorder %s21, 1
      %p100 = por %p98, %p99
      %p102 = scmp.ne.s32.totalorder %s87, %s101
      %p103 = scmp.eq.s32.totalorder %s21, 0
      %p104 = por %p102, %p103
      %s106 = sadd.s32 %s105, 1
      %p109 = scmp.eq.s32.totalorder %s15, 1
      %p110 = scmp.ne.s32.totalorder %s105, %s107
      %p111 = scmp.eq.s32.totalorder %s15, 0
      %p112 = por %p110, %p111
      %p113 = scmp.ne.s32.totalorder %s105, %s107
      %p114 = scmp.eq.s32.totalorder %s20, 1
      %p115 = por %p113, %p114
      %p116 = scmp.ne.s32.totalorder %s107, %s108
      %p117 = scmp.eq.s32.totalorder %s20, 0
      %p118 = por %p116, %p117
      %p119 = scmp.ne.s32.totalorder %s107, %s108
      %p120 = scmp.eq.s32.totalorder %s21, 1
      %p121 = por %p119, %p120
      %p123 = scmp.ne.s32.totalorder %s108, %s122
      %p124 = scmp.eq.s32.totalorder %s21, 0
      %p125 = por %p123, %p124
      %s127 = sadd.s32 %s126, 1
      %p130 = scmp.eq.s32.totalorder %s15, 1
      %p131 = scmp.ne.s32.totalorder %s126, %s128
      %p132 = scmp.eq.s32.totalorder %s15, 0
      %p133 = por %p131, %p132
      %p134 = scmp.ne.s32.totalorder %s126, %s128
      %p135 = scmp.eq.s32.totalorder %s20, 1
      %p136 = por %p134, %p135
      %p137 = scmp.ne.s32.totalorder %s128, %s129
      %p138 = scmp.eq.s32.totalorder %s20, 0
      %p139 = por %p137, %p138
      %p140 = scmp.ne.s32.totalorder %s128, %s129
      %p141 = scmp.eq.s32.totalorder %s21, 1
      %p142 = por %p140, %p141
      %p144 = scmp.ne.s32.totalorder %s129, %s143
      %p145 = scmp.eq.s32.totalorder %s21, 0
      %p146 = por %p144, %p145
      %s148 = sadd.s32 %s147, 1
      %p151 = scmp.eq.s32.totalorder %s15, 1
      %p152 = scmp.ne.s32.totalorder %s147, %s149
      %p153 = scmp.eq.s32.totalorder %s15, 0
      %p154 = por %p152, %p153
      %p155 = scmp.ne.s32.totalorder %s147, %s149
      %p156 = scmp.eq.s32.totalorder %s20, 1
      %p157 = por %p155, %p156
      %p158 = scmp.ne.s32.totalorder %s149, %s150
      %p159 = scmp.eq.s32.totalorder %s20, 0
      %p160 = por %p158, %p159
      %p161 = scmp.ne.s32.totalorder %s149, %s150
      %p162 = scmp.eq.s32.totalorder %s21, 1
      %p163 = por %p161, %p162
      %p165 = scmp.ne.s32.totalorder %s150, %s164
      %p166 = scmp.eq.s32.totalorder %s21, 0
      %p167 = por %p165, %p166
      %s168 = ssub.s32 %s22, %s34
      %s169 = ssub.s32 %s23, %s30
      %s170 = sor.u32 %s168, %s169
      %p171 = scmp.eq.s32.totalorder %s170, 0
      %s173 = sadd.s32 %s172, 1
      %s174 = scalar_select %p171, %s172, %s173
      %p177 = pneg %p171
      %p178 = scmp.eq.s32.totalorder %s15, 1
      %p179 = por %p177, %p178
      %p180 = scmp.ne.s32.totalorder %s172, %s175
      %p181 = scmp.eq.s32.totalorder %s15, 0
      %p182 = por %p180, %p181
      %p183 = scmp.ne.s32.totalorder %s172, %s175
      %p184 = scmp.eq.s32.totalorder %s20, 1
      %p185 = por %p183, %p184
      %p186 = scmp.ne.s32.totalorder %s175, %s176
      %p187 = scmp.eq.s32.totalorder %s20, 0
      %p188 = por %p186, %p187
      %p189 = scmp.ne.s32.totalorder %s175, %s176
      %p190 = scmp.eq.s32.totalorder %s21, 1
      %p191 = por %p189, %p190
      %p193 = scmp.ne.s32.totalorder %s176, %s192
      %p194 = scmp.eq.s32.totalorder %s21, 0
      %p195 = por %p193, %p194
      %p196 = scmp.le.s32.totalorder 1, %s15
      %p197 = scmp.lt.s32.totalorder %s15, 3
      %p198 = pnand %p196, %p197
      %p199 = pneg %p198
      // Predicated region
      $region9: #{tpu_custom_call.1} parent=5 // pred_check
        _
      $region10: #{tpu_custom_call.1} parent=5 // pred_check_branch
        %201 = sbr.rel (%p198) target = $region12
      $region11: #{tpu_custom_call.1} parent=5 // pred_region
        %s202 = ssub.s32 %s15, 1
        // Predicated region
        $region13: #{tpu_custom_call.1} parent=11 // pred_check
          %p203 = pneg %p76
        $region14: #{tpu_custom_call.1} parent=11 // pred_check_branch
          %205 = sbr.rel (%p203) target = $region16
        $region15: #{tpu_custom_call.1} parent=11 // pred_region
          _
        $region16: #{tpu_custom_call.1} parent=11 // pred_fallthru
          _
        // Predicated region
        $region17: #{tpu_custom_call.1} parent=11 // pred_check
          %p206 = pneg %p97
        $region18: #{tpu_custom_call.1} parent=11 // pred_check_branch
          %208 = sbr.rel (%p206) target = $region20
        $region19: #{tpu_custom_call.1} parent=11 // pred_region
          _
        $region20: #{tpu_custom_call.1} parent=11 // pred_fallthru
          _
        // Predicated region
        $region21: #{tpu_custom_call.1} parent=11 // pred_check
          %p209 = pneg %p118
        $region22: #{tpu_custom_call.1} parent=11 // pred_check_branch
          %211 = sbr.rel (%p209) target = $region24
        $region23: #{tpu_custom_call.1} parent=11 // pred_region
          _
        $region24: #{tpu_custom_call.1} parent=11 // pred_fallthru
          _
        // Predicated region
        $region25: #{tpu_custom_call.1} parent=11 // pred_check
          %p212 = pneg %p139
        $region26: #{tpu_custom_call.1} parent=11 // pred_check_branch
          %214 = sbr.rel (%p212) target = $region28
        $region27: #{tpu_custom_call.1} parent=11 // pred_region
          _
        $region28: #{tpu_custom_call.1} parent=11 // pred_fallthru
          _
        // Predicated region
        $region29: #{tpu_custom_call.1} parent=11 // pred_check
          %p215 = pneg %p160
        $region30: #{tpu_custom_call.1} parent=11 // pred_check_branch
          %217 = sbr.rel (%p215) target = $region32
        $region31: #{tpu_custom_call.1} parent=11 // pred_region
          _
        $region32: #{tpu_custom_call.1} parent=11 // pred_fallthru
          _
      $region12: #{tpu_custom_call.1} parent=5 // pred_fallthru
        _
      %p218 = scmp.lt.s32.totalorder %s15, 2
      // Predicated region
      $region33: #{tpu_custom_call.1} parent=5 // pred_check
        %p219 = pneg %p218
      $region34: #{tpu_custom_call.1} parent=5 // pred_check_branch
        %221 = sbr.rel (%p219) target = $region36
      $region35: #{tpu_custom_call.1} parent=5 // pred_region
        // Predicated region
        $region37: #{tpu_custom_call.1} parent=35 // pred_check
          %p222 = pneg %p49
        $region38: #{tpu_custom_call.1} parent=35 // pred_check_branch
          %224 = sbr.rel (%p222) target = $region40
        $region39: #{tpu_custom_call.1} parent=35 // pred_region
          %s225 = smul.u32 2, %s23
          %p226 = scmp.lt.s32.totalorder %s22, 1
          %s227 = scalar_select %p226, %s22, 1
          %p228 = scmp.lt.s32.totalorder %s225, 1
          %s229 = scalar_select %p228, %s225, 1
          %s230 = smul.addr %s227, 2
          %s231 = sadd.s32 %s229, %s230
          %s232 = smul.addr %s231, 4
          %s233 = scalar_lea.vmem %s0, %s232
          %s234 = smul.u32 2, %s23
        $region40: #{tpu_custom_call.1} parent=35 // pred_fallthru
          _
      $region36: #{tpu_custom_call.1} parent=5 // pred_fallthru
        _
      %p235 = scmp.le.s32.totalorder 1, %s15
      %p236 = scmp.lt.s32.totalorder %s15, 3
      %p237 = pnand %p235, %p236
      %p238 = pneg %p237
      // Predicated region
      $region41: #{tpu_custom_call.1} parent=5 // pred_check
        _
      $region42: #{tpu_custom_call.1} parent=5 // pred_check_branch
        %240 = sbr.rel (%p237) target = $region44
      $region43: #{tpu_custom_call.1} parent=5 // pred_region
        %s241 = ssub.s32 %s15, 1
        %s242 = smul.u32 2, %s25
        %p243 = scmp.lt.s32.totalorder %s24, 1
        %s244 = scalar_select %p243, %s24, 1
        %p245 = scmp.lt.s32.totalorder %s242, 1
        %s246 = scalar_select %p245, %s242, 1
        %s247 = smul.addr %s244, 2
        %s248 = sadd.s32 %s246, %s247
        %s249 = smul.addr %s248, 4
        %s250 = scalar_lea.vmem %s0, %s249
        %p251 = pneg %p55
        %p252 = pneg %p52
        %p253 = pneg %p76
        %p254 = pneg %p73
        %p255 = pneg %p97
        %p256 = pneg %p94
        %p257 = pneg %p118
        %p258 = pneg %p115
        %p259 = pneg %p139
        %p260 = pneg %p136
        %p261 = pneg %p160
        %p262 = pneg %p157
        %p263 = pneg %p188
        %p264 = pneg %p185
        %s265 = sand.u32 %s175, 1
        %s266 = scalar_lea.sflag [#allocation3], %s265
        %s267 = sand.u32 %s175, 1
        %s268 = smul.addr %s267, 8
        %s269 = scalar_lea.vmem [#allocation2], %s268
        %s270 = smul.u32 2, %s25
        %p271 = scmp.lt.s32.totalorder %s24, 1
        %s272 = scalar_select %p271, %s24, 1
        %p273 = scmp.lt.s32.totalorder %s270, 1
        %s274 = scalar_select %p273, %s270, 1
        %s275 = smul.addr %s272, 2
        %s276 = sadd.s32 %s274, %s275
        %s277 = smul.addr %s276, 4
        %s278 = scalar_lea.vmem %s0, %s277
        %s279 = smul.u32 2, %s25
        %s280 = smul.u32 2, %s25
        %v281 = vld [vmem:[%s3] sm:$0xff]
        %v282 = vld [vmem:[%s3 + $0x8] sm:$0xff]
        %v283 = vld [vmem:[%s3 + $0x10] sm:$0xff]
        %v284 = vld [vmem:[%s3 + $0x18] sm:$0xff]
        %v285 = vld [vmem:[%s3 + $0x20] sm:$0xff]
        %v286 = vld [vmem:[%s3 + $0x28] sm:$0xff]
        %v287 = vld [vmem:[%s3 + $0x30] sm:$0xff]
        %v288 = vld [vmem:[%s3 + $0x38] sm:$0xff]
        %v289 = vld [vmem:[%s3 + $0x40] sm:$0xff]
        %v290 = vld [vmem:[%s3 + $0x48] sm:$0xff]
        %v291 = vld [vmem:[%s3 + $0x50] sm:$0xff]
        %v292 = vld [vmem:[%s3 + $0x58] sm:$0xff]
        %v293 = vld [vmem:[%s3 + $0x60] sm:$0xff]
        %v294 = vld [vmem:[%s3 + $0x68] sm:$0xff]
        %v295 = vld [vmem:[%s3 + $0x70] sm:$0xff]
        %v296 = vld [vmem:[%s3 + $0x78] sm:$0xff]
        %v297 = vld [vmem:[%s3 + $0x80] sm:$0xff]
        %v298 = vld [vmem:[%s3 + $0x88] sm:$0xff]
        %v299 = vld [vmem:[%s3 + $0x90] sm:$0xff]
        %v300 = vld [vmem:[%s3 + $0x98] sm:$0xff]
        %v301 = vld [vmem:[%s3 + $0xa0] sm:$0xff]
        %v302 = vld [vmem:[%s3 + $0xa8] sm:$0xff]
        %v303 = vld [vmem:[%s3 + $0xb0] sm:$0xff]
        %v304 = vld [vmem:[%s3 + $0xb8] sm:$0xff]
        %v305 = vld [vmem:[%s3 + $0xc0] sm:$0xff]
        %v306 = vld [vmem:[%s3 + $0xc8] sm:$0xff]
        %v307 = vld [vmem:[%s3 + $0xd0] sm:$0xff]
        %v308 = vld [vmem:[%s3 + $0xd8] sm:$0xff]
        %v309 = vld [vmem:[%s3 + $0xe0] sm:$0xff]
        %v310 = vld [vmem:[%s3 + $0xe8] sm:$0xff]
        %v311 = vld [vmem:[%s3 + $0xf0] sm:$0xff]
        %v312 = vld [vmem:[%s3 + $0xf8] sm:$0xff]
        %v313 = vld [vmem:[%s4] sm:$0xff]
        %v314 = vld [vmem:[%s4 + $0x8] sm:$0xff]
        %v315 = vld [vmem:[%s4 + $0x10] sm:$0xff]
        %v316 = vld [vmem:[%s4 + $0x18] sm:$0xff]
        %v317 = vld [vmem:[%s5] sm:$0xff]
        %v318 = vld [vmem:[%s5 + $0x8] sm:$0xff]
        %v319 = vld [vmem:[%s5 + $0x10] sm:$0xff]
        %v320 = vld [vmem:[%s5 + $0x18] sm:$0xff]
        %v321 = vld [vmem:[%s278] sm:$0xff]
        %v323 = vcombine.high %v321, %v321
        %vm325 = vcmask 1043456
        %v326 = vsel %vm325, %v321, 0.0
        %v327 = vrot.slane %v326, 4
        %v328 = vadd.f32 %v326, %v327
        %v329 = vrot.slane %v328, 2
        %v330 = vadd.f32 %v328, %v329
        %v331 = vrot.slane %v330, 1
        %v332 = vadd.f32 %v330, %v331
        %v333 = vsel %vm325, %v323, 0.0
        %v334 = vrot.slane %v333, 4
        %v335 = vadd.f32 %v333, %v334
        %v336 = vrot.slane %v335, 2
        %v337 = vadd.f32 %v335, %v336
        %v338 = vrot.slane %v337, 1
        %v339 = vadd.f32 %v337, %v338
        %340 = vmatprep.subr.mxu0 0.0
        %341 = vmatpush1.msra.mxu0 %v296
        %342 = vmatprep.subr.mxu0 0.0
        %343 = vmatpush1.msra.mxu0 %v295
        %344 = vmatprep.subr.mxu0 0.0
        %345 = vmatpush1.msra.mxu0 %v294
        %346 = vmatprep.subr.mxu0 0.0
        %347 = vmatpush1.msra.mxu0 %v293
        %348 = vmatprep.subr.mxu0 0.0
        %349 = vmatpush1.msra.mxu0 %v292
        %350 = vmatprep.subr.mxu0 0.0
        %351 = vmatpush1.msra.mxu0 %v291
        %352 = vmatprep.subr.mxu0 0.0
        %353 = vmatpush1.msra.mxu0 %v290
        %354 = vmatprep.subr.mxu0 0.0
        %355 = vmatpush1.msra.mxu0 %v289
        %356 = vmatprep.subr.mxu0 0.0
        %357 = vmatpush1.msra.mxu0 %v288
        %358 = vmatprep.subr.mxu0 0.0
        %359 = vmatpush1.msra.mxu0 %v287
        %360 = vmatprep.subr.mxu0 0.0
        %361 = vmatpush1.msra.mxu0 %v286
        %362 = vmatprep.subr.mxu0 0.0
        %363 = vmatpush1.msra.mxu0 %v285
        %364 = vmatprep.subr.mxu0 0.0
        %365 = vmatpush1.msra.mxu0 %v284
        %366 = vmatprep.subr.mxu0 0.0
        %367 = vmatpush1.msra.mxu0 %v283
        %368 = vmatprep.subr.mxu0 0.0
        %369 = vmatpush1.msra.mxu0 %v282
        %370 = vmatprep.subr.mxu0 0.0
        %371 = vmatpush1.msra.mxu0 %v281
        %372 = vmatprep.subr.mxu0 0.0
        %373 = vmatpush2.msra.mxu0 %v312
        %374 = vmatprep.subr.mxu0 0.0
        %375 = vmatpush2.msra.mxu0 %v311
        %376 = vmatprep.subr.mxu0 0.0
        %377 = vmatpush2.msra.mxu0 %v310
        %378 = vmatprep.subr.mxu0 0.0
        %379 = vmatpush2.msra.mxu0 %v309
        %380 = vmatprep.subr.mxu0 0.0
        %381 = vmatpush2.msra.mxu0 %v308
        %382 = vmatprep.subr.mxu0 0.0
        %383 = vmatpush2.msra.mxu0 %v307
        %384 = vmatprep.subr.mxu0 0.0
        %385 = vmatpush2.msra.mxu0 %v306
        %386 = vmatprep.subr.mxu0 0.0
        %387 = vmatpush2.msra.mxu0 %v305
        %388 = vmatprep.subr.mxu0 0.0
        %389 = vmatpush2.msra.mxu0 %v304
        %390 = vmatprep.subr.mxu0 0.0
        %391 = vmatpush2.msra.mxu0 %v303
        %392 = vmatprep.subr.mxu0 0.0
        %393 = vmatpush2.msra.mxu0 %v302
        %394 = vmatprep.subr.mxu0 0.0
        %395 = vmatpush2.msra.mxu0 %v301
        %396 = vmatprep.subr.mxu0 0.0
        %397 = vmatpush2.msra.mxu0 %v300
        %398 = vmatprep.subr.mxu0 0.0
        %399 = vmatpush2.msra.mxu0 %v299
        %400 = vmatprep.subr.mxu0 0.0
        %401 = vmatpush2.msra.mxu0 %v298
        %402 = vmatprep.subr.mxu0 0.0
        %403 = vmatpush2.msra.mxu0 %v297
        %404 = vmatprep.mubr.f32.mxu0 %v339
        %405 = vmatmul.mubr.f32.gmra.mxu0 %v332
        %v406 = vpop.f32.mrf.mxu0
        %v407 = vadd.f32 0.0, %v406
        %v408 = vpop.f32.mrf.mxu0
        %409 = vdwg.mxu0
        %v410 = vmul.f32 %v407, 0.015625
        %vm411 = vcmask 130048
        %v413 = vsel %vm411, %v410, 0
        %415 = vmatprep.subr.mxu0 0.0
        %416 = vmatpush1.msra.mxu0 0.0
        %417 = vmatprep.subr.mxu0 0.0
        %418 = vmatpush1.msra.mxu0 0.0
        %419 = vmatprep.subr.mxu0 0.0
        %420 = vmatpush1.msra.mxu0 0.0
        %421 = vmatprep.subr.mxu0 0.0
        %422 = vmatpush1.msra.mxu0 0.0
        %423 = vmatprep.subr.mxu0 0.0
        %424 = vmatpush1.msra.mxu0 0.0
        %425 = vmatprep.subr.mxu0 0.0
        %426 = vmatpush1.msra.mxu0 0.0
        %427 = vmatprep.subr.mxu0 0.0
        %428 = vmatpush1.msra.mxu0 0.0
        %429 = vmatprep.subr.mxu0 0.0
        %430 = vmatpush1.msra.mxu0 0.0
        %431 = vmatprep.subr.mxu0 0.0
        %432 = vmatpush1.msra.mxu0 0.0
        %433 = vmatprep.subr.mxu0 0.0
        %434 = vmatpush1.msra.mxu0 0.0
        %435 = vmatprep.subr.mxu0 0.0
        %436 = vmatpush1.msra.mxu0 0.0
        %437 = vmatprep.subr.mxu0 0.0
        %438 = vmatpush1.msra.mxu0 0.0
        %439 = vmatprep.subr.mxu0 0.0
        %440 = vmatpush1.msra.mxu0 0.0
        %441 = vmatprep.subr.mxu0 0.0
        %442 = vmatpush1.msra.mxu0 0.0
        %443 = vmatprep.subr.mxu0 %v316
        %444 = vmatpush1.msra.mxu0 %v315
        %445 = vmatprep.subr.mxu0 %v314
        %446 = vmatpush1.msra.mxu0 %v313
        %447 = vmatprep.subr.mxu0 0.0
        %448 = vmatpush2.msra.mxu0 0.0
        %449 = vmatprep.subr.mxu0 0.0
        %450 = vmatpush2.msra.mxu0 0.0
        %451 = vmatprep.subr.mxu0 0.0
        %452 = vmatpush2.msra.mxu0 0.0
        %453 = vmatprep.subr.mxu0 0.0
        %454 = vmatpush2.msra.mxu0 0.0
        %455 = vmatprep.subr.mxu0 0.0
        %456 = vmatpush2.msra.mxu0 0.0
        %457 = vmatprep.subr.mxu0 0.0
        %458 = vmatpush2.msra.mxu0 0.0
        %459 = vmatprep.subr.mxu0 0.0
        %460 = vmatpush2.msra.mxu0 0.0
        %461 = vmatprep.subr.mxu0 0.0
        %462 = vmatpush2.msra.mxu0 0.0
        %463 = vmatprep.subr.mxu0 0.0
        %464 = vmatpush2.msra.mxu0 0.0
        %465 = vmatprep.subr.mxu0 0.0
        %466 = vmatpush2.msra.mxu0 0.0
        %467 = vmatprep.subr.mxu0 0.0
        %468 = vmatpush2.msra.mxu0 0.0
        %469 = vmatprep.subr.mxu0 0.0
        %470 = vmatpush2.msra.mxu0 0.0
        %471 = vmatprep.subr.mxu0 0.0
        %472 = vmatpush2.msra.mxu0 0.0
        %473 = vmatprep.subr.mxu0 0.0
        %474 = vmatpush2.msra.mxu0 0.0
        %475 = vmatprep.subr.mxu0 0.0
        %476 = vmatpush2.msra.mxu0 0.0
        %477 = vmatprep.subr.mxu0 0.0
        %478 = vmatpush2.msra.mxu0 0.0
        %479 = vmatprep.mubr.f32.mxu0 0.0
        %480 = vmatmul.mubr.f32.gmra.mxu0 %v413
        %v481 = vpop.f32.mrf.mxu0
        %v482 = vadd.f32 0.0, %v481
        %v483 = vpop.f32.mrf.mxu0
        %v484 = vadd.f32 0.0, %v483
        %485 = vdwg.mxu0
        %v486 = vlaneseq
        %v487 = vshrl.u32 %v486, 7
        %v488 = vsub.s32 0, %v487
        %v489 = vrot.slane %v482, %v488
        %v490 = vlaneseq
        %v491 = vshrl.u32 %v490, 7
        %v492 = vsub.s32 0, %v491
        %v493 = vrot.slane %v484, %v492
        %v496 = vcombine.low %v489, %v493
        %v498 = vsub.f32 %v321, %v496
        %v499 = vmul.f32 %v498, %v498
        %v501 = vcombine.high %v499, %v499
        %v503 = vsel %vm325, %v499, 0.0
        %v504 = vrot.slane %v503, 4
        %v505 = vadd.f32 %v503, %v504
        %v506 = vrot.slane %v505, 2
        %v507 = vadd.f32 %v505, %v506
        %v508 = vrot.slane %v507, 1
        %v509 = vadd.f32 %v507, %v508
        %v510 = vsel %vm325, %v501, 0.0
        %v511 = vrot.slane %v510, 4
        %v512 = vadd.f32 %v510, %v511
        %v513 = vrot.slane %v512, 2
        %v514 = vadd.f32 %v512, %v513
        %v515 = vrot.slane %v514, 1
        %v516 = vadd.f32 %v514, %v515
        %517 = vmatprep.subr.mxu0 0.0
        %518 = vmatpush1.msra.mxu0 %v296
        %519 = vmatprep.subr.mxu0 0.0
        %520 = vmatpush1.msra.mxu0 %v295
        %521 = vmatprep.subr.mxu0 0.0
        %522 = vmatpush1.msra.mxu0 %v294
        %523 = vmatprep.subr.mxu0 0.0
        %524 = vmatpush1.msra.mxu0 %v293
        %525 = vmatprep.subr.mxu0 0.0
        %526 = vmatpush1.msra.mxu0 %v292
        %527 = vmatprep.subr.mxu0 0.0
        %528 = vmatpush1.msra.mxu0 %v291
        %529 = vmatprep.subr.mxu0 0.0
        %530 = vmatpush1.msra.mxu0 %v290
        %531 = vmatprep.subr.mxu0 0.0
        %532 = vmatpush1.msra.mxu0 %v289
        %533 = vmatprep.subr.mxu0 0.0
        %534 = vmatpush1.msra.mxu0 %v288
        %535 = vmatprep.subr.mxu0 0.0
        %536 = vmatpush1.msra.mxu0 %v287
        %537 = vmatprep.subr.mxu0 0.0
        %538 = vmatpush1.msra.mxu0 %v286
        %539 = vmatprep.subr.mxu0 0.0
        %540 = vmatpush1.msra.mxu0 %v285
        %541 = vmatprep.subr.mxu0 0.0
        %542 = vmatpush1.msra.mxu0 %v284
        %543 = vmatprep.subr.mxu0 0.0
        %544 = vmatpush1.msra.mxu0 %v283
        %545 = vmatprep.subr.mxu0 0.0
        %546 = vmatpush1.msra.mxu0 %v282
        %547 = vmatprep.subr.mxu0 0.0
        %548 = vmatpush1.msra.mxu0 %v281
        %549 = vmatprep.subr.mxu0 0.0
        %550 = vmatpush2.msra.mxu0 %v312
        %551 = vmatprep.subr.mxu0 0.0
        %552 = vmatpush2.msra.mxu0 %v311
        %553 = vmatprep.subr.mxu0 0.0
        %554 = vmatpush2.msra.mxu0 %v310
        %555 = vmatprep.subr.mxu0 0.0
        %556 = vmatpush2.msra.mxu0 %v309
        %557 = vmatprep.subr.mxu0 0.0
        %558 = vmatpush2.msra.mxu0 %v308
        %559 = vmatprep.subr.mxu0 0.0
        %560 = vmatpush2.msra.mxu0 %v307
        %561 = vmatprep.subr.mxu0 0.0
        %562 = vmatpush2.msra.mxu0 %v306
        %563 = vmatprep.subr.mxu0 0.0
        %564 = vmatpush2.msra.mxu0 %v305
        %565 = vmatprep.subr.mxu0 0.0
        %566 = vmatpush2.msra.mxu0 %v304
        %567 = vmatprep.subr.mxu0 0.0
        %568 = vmatpush2.msra.mxu0 %v303
        %569 = vmatprep.subr.mxu0 0.0
        %570 = vmatpush2.msra.mxu0 %v302
        %571 = vmatprep.subr.mxu0 0.0
        %572 = vmatpush2.msra.mxu0 %v301
        %573 = vmatprep.subr.mxu0 0.0
        %574 = vmatpush2.msra.mxu0 %v300
        %575 = vmatprep.subr.mxu0 0.0
        %576 = vmatpush2.msra.mxu0 %v299
        %577 = vmatprep.subr.mxu0 0.0
        %578 = vmatpush2.msra.mxu0 %v298
        %579 = vmatprep.subr.mxu0 0.0
        %580 = vmatpush2.msra.mxu0 %v297
        %581 = vmatprep.mubr.f32.mxu0 %v516
        %582 = vmatmul.mubr.f32.gmra.mxu0 %v509
        %v583 = vpop.f32.mrf.mxu0
        %v584 = vadd.f32 0.0, %v583
        %v585 = vpop.f32.mrf.mxu0
        %586 = vdwg.mxu0
        %v587 = vmul.f32 %v584, 0.015873017
        %v588 = vrsqrt.pop %v587
        %v589 = vmul.f32 %v587, %v588
        %vm590 = vcmp.eq.f32.partialorder %v587, inf
        %v591 = vsel %vm590, %v587, %v589
        %vm592 = vcmp.eq.f32.partialorder %v587, 0.0
        %v593 = vand.u32 %v587, 2147483648
        %v594 = vsel %vm592, %v593, %v591
        %v595 = vadd.f32 %v594, 1e-06
        %v596 = vrcp.pop %v595
        %v597 = vmul.f32 1.0, %v596
        %v599 = vsel %vm411, %v597, 0
        %601 = vmatprep.subr.mxu0 0.0
        %602 = vmatpush1.msra.mxu0 0.0
        %603 = vmatprep.subr.mxu0 0.0
        %604 = vmatpush1.msra.mxu0 0.0
        %605 = vmatprep.subr.mxu0 0.0
        %606 = vmatpush1.msra.mxu0 0.0
        %607 = vmatprep.subr.mxu0 0.0
        %608 = vmatpush1.msra.mxu0 0.0
        %609 = vmatprep.subr.mxu0 0.0
        %610 = vmatpush1.msra.mxu0 0.0
        %611 = vmatprep.subr.mxu0 0.0
        %612 = vmatpush1.msra.mxu0 0.0
        %613 = vmatprep.subr.mxu0 0.0
        %614 = vmatpush1.msra.mxu0 0.0
        %615 = vmatprep.subr.mxu0 0.0
        %616 = vmatpush1.msra.mxu0 0.0
        %617 = vmatprep.subr.mxu0 0.0
        %618 = vmatpush1.msra.mxu0 0.0
        %619 = vmatprep.subr.mxu0 0.0
        %620 = vmatpush1.msra.mxu0 0.0
        %621 = vmatprep.subr.mxu0 0.0
        %622 = vmatpush1.msra.mxu0 0.0
        %623 = vmatprep.subr.mxu0 0.0
        %624 = vmatpush1.msra.mxu0 0.0
        %625 = vmatprep.subr.mxu0 0.0
        %626 = vmatpush1.msra.mxu0 0.0
        %627 = vmatprep.subr.mxu0 0.0
        %628 = vmatpush1.msra.mxu0 0.0
        %629 = vmatprep.subr.mxu0 %v316
        %630 = vmatpush1.msra.mxu0 %v315
        %631 = vmatprep.subr.mxu0 %v314
        %632 = vmatpush1.msra.mxu0 %v313
        %633 = vmatprep.subr.mxu0 0.0
        %634 = vmatpush2.msra.mxu0 0.0
        %635 = vmatprep.subr.mxu0 0.0
        %636 = vmatpush2.msra.mxu0 0.0
        %637 = vmatprep.subr.mxu0 0.0
        %638 = vmatpush2.msra.mxu0 0.0
        %639 = vmatprep.subr.mxu0 0.0
        %640 = vmatpush2.msra.mxu0 0.0
        %641 = vmatprep.subr.mxu0 0.0
        %642 = vmatpush2.msra.mxu0 0.0
        %643 = vmatprep.subr.mxu0 0.0
        %644 = vmatpush2.msra.mxu0 0.0
        %645 = vmatprep.subr.mxu0 0.0
        %646 = vmatpush2.msra.mxu0 0.0
        %647 = vmatprep.subr.mxu0 0.0
        %648 = vmatpush2.msra.mxu0 0.0
        %649 = vmatprep.subr.mxu0 0.0
        %650 = vmatpush2.msra.mxu0 0.0
        %651 = vmatprep.subr.mxu0 0.0
        %652 = vmatpush2.msra.mxu0 0.0
        %653 = vmatprep.subr.mxu0 0.0
        %654 = vmatpush2.msra.mxu0 0.0
        %655 = vmatprep.subr.mxu0 0.0
        %656 = vmatpush2.msra.mxu0 0.0
        %657 = vmatprep.subr.mxu0 0.0
        %658 = vmatpush2.msra.mxu0 0.0
        %659 = vmatprep.subr.mxu0 0.0
        %660 = vmatpush2.msra.mxu0 0.0
        %661 = vmatprep.subr.mxu0 0.0
        %662 = vmatpush2.msra.mxu0 0.0
        %663 = vmatprep.subr.mxu0 0.0
        %664 = vmatpush2.msra.mxu0 0.0
        %665 = vmatprep.mubr.f32.mxu0 0.0
        %666 = vmatmul.mubr.f32.gmra.mxu0 %v599
        %v667 = vpop.f32.mrf.mxu0
        %v668 = vadd.f32 0.0, %v667
        %v669 = vpop.f32.mrf.mxu0
        %v670 = vadd.f32 0.0, %v669
        %671 = vdwg.mxu0
        %v672 = vld [vmem:[%s1] sm:$0xf]
        %v674 = vsel %vm411, %v672, 0
        %676 = vmatprep.subr.mxu0 0.0
        %677 = vmatpush1.msra.mxu0 0.0
        %678 = vmatprep.subr.mxu0 0.0
        %679 = vmatpush1.msra.mxu0 0.0
        %680 = vmatprep.subr.mxu0 0.0
        %681 = vmatpush1.msra.mxu0 0.0
        %682 = vmatprep.subr.mxu0 0.0
        %683 = vmatpush1.msra.mxu0 0.0
        %684 = vmatprep.subr.mxu0 0.0
        %685 = vmatpush1.msra.mxu0 0.0
        %686 = vmatprep.subr.mxu0 0.0
        %687 = vmatpush1.msra.mxu0 0.0
        %688 = vmatprep.subr.mxu0 0.0
        %689 = vmatpush1.msra.mxu0 0.0
        %690 = vmatprep.subr.mxu0 0.0
        %691 = vmatpush1.msra.mxu0 0.0
        %692 = vmatprep.subr.mxu0 0.0
        %693 = vmatpush1.msra.mxu0 0.0
        %694 = vmatprep.subr.mxu0 0.0
        %695 = vmatpush1.msra.mxu0 0.0
        %696 = vmatprep.subr.mxu0 0.0
        %697 = vmatpush1.msra.mxu0 0.0
        %698 = vmatprep.subr.mxu0 0.0
        %699 = vmatpush1.msra.mxu0 0.0
        %700 = vmatprep.subr.mxu0 0.0
        %701 = vmatpush1.msra.mxu0 0.0
        %702 = vmatprep.subr.mxu0 0.0
        %703 = vmatpush1.msra.mxu0 0.0
        %704 = vmatprep.subr.mxu0 %v320
        %705 = vmatpush1.msra.mxu0 %v319
        %706 = vmatprep.subr.mxu0 %v318
        %707 = vmatpush1.msra.mxu0 %v317
        %708 = vmatprep.subr.mxu0 0.0
        %709 = vmatpush2.msra.mxu0 0.0
        %710 = vmatprep.subr.mxu0 0.0
        %711 = vmatpush2.msra.mxu0 0.0
        %712 = vmatprep.subr.mxu0 0.0
        %713 = vmatpush2.msra.mxu0 0.0
        %714 = vmatprep.subr.mxu0 0.0
        %715 = vmatpush2.msra.mxu0 0.0
        %716 = vmatprep.subr.mxu0 0.0
        %717 = vmatpush2.msra.mxu0 0.0
        %718 = vmatprep.subr.mxu0 0.0
        %719 = vmatpush2.msra.mxu0 0.0
        %720 = vmatprep.subr.mxu0 0.0
        %721 = vmatpush2.msra.mxu0 0.0
        %722 = vmatprep.subr.mxu0 0.0
        %723 = vmatpush2.msra.mxu0 0.0
        %724 = vmatprep.subr.mxu0 0.0
        %725 = vmatpush2.msra.mxu0 0.0
        %726 = vmatprep.subr.mxu0 0.0
        %727 = vmatpush2.msra.mxu0 0.0
        %728 = vmatprep.subr.mxu0 0.0
        %729 = vmatpush2.msra.mxu0 0.0
        %730 = vmatprep.subr.mxu0 0.0
        %731 = vmatpush2.msra.mxu0 0.0
        %732 = vmatprep.subr.mxu0 0.0
        %733 = vmatpush2.msra.mxu0 0.0
        %734 = vmatprep.subr.mxu0 0.0
        %735 = vmatpush2.msra.mxu0 0.0
        %736 = vmatprep.subr.mxu0 0.0
        %737 = vmatpush2.msra.mxu0 0.0
        %738 = vmatprep.subr.mxu0 0.0
        %739 = vmatpush2.msra.mxu0 0.0
        %740 = vmatprep.mubr.f32.mxu0 0.0
        %741 = vmatmul.mubr.f32.gmra.mxu0 %v674
        %v742 = vpop.f32.mrf.mxu0
        %v743 = vadd.f32 0.0, %v742
        %v744 = vpop.f32.mrf.mxu0
        %v745 = vadd.f32 0.0, %v744
        %746 = vdwg.mxu0
        %v747 = vld [vmem:[%s2] sm:$0xf]
        %v749 = vsel %vm411, %v747, 0
        %751 = vmatprep.subr.mxu0 0.0
        %752 = vmatpush1.msra.mxu0 0.0
        %753 = vmatprep.subr.mxu0 0.0
        %754 = vmatpush1.msra.mxu0 0.0
        %755 = vmatprep.subr.mxu0 0.0
        %756 = vmatpush1.msra.mxu0 0.0
        %757 = vmatprep.subr.mxu0 0.0
        %758 = vmatpush1.msra.mxu0 0.0
        %759 = vmatprep.subr.mxu0 0.0
        %760 = vmatpush1.msra.mxu0 0.0
        %761 = vmatprep.subr.mxu0 0.0
        %762 = vmatpush1.msra.mxu0 0.0
        %763 = vmatprep.subr.mxu0 0.0
        %764 = vmatpush1.msra.mxu0 0.0
        %765 = vmatprep.subr.mxu0 0.0
        %766 = vmatpush1.msra.mxu0 0.0
        %767 = vmatprep.subr.mxu0 0.0
        %768 = vmatpush1.msra.mxu0 0.0
        %769 = vmatprep.subr.mxu0 0.0
        %770 = vmatpush1.msra.mxu0 0.0
        %771 = vmatprep.subr.mxu0 0.0
        %772 = vmatpush1.msra.mxu0 0.0
        %773 = vmatprep.subr.mxu0 0.0
        %774 = vmatpush1.msra.mxu0 0.0
        %775 = vmatprep.subr.mxu0 0.0
        %776 = vmatpush1.msra.mxu0 0.0
        %777 = vmatprep.subr.mxu0 0.0
        %778 = vmatpush1.msra.mxu0 0.0
        %779 = vmatprep.subr.mxu0 %v320
        %780 = vmatpush1.msra.mxu0 %v319
        %781 = vmatprep.subr.mxu0 %v318
        %782 = vmatpush1.msra.mxu0 %v317
        %783 = vmatprep.subr.mxu0 0.0
        %784 = vmatpush2.msra.mxu0 0.0
        %785 = vmatprep.subr.mxu0 0.0
        %786 = vmatpush2.msra.mxu0 0.0
        %787 = vmatprep.subr.mxu0 0.0
        %788 = vmatpush2.msra.mxu0 0.0
        %789 = vmatprep.subr.mxu0 0.0
        %790 = vmatpush2.msra.mxu0 0.0
        %791 = vmatprep.subr.mxu0 0.0
        %792 = vmatpush2.msra.mxu0 0.0
        %793 = vmatprep.subr.mxu0 0.0
        %794 = vmatpush2.msra.mxu0 0.0
        %795 = vmatprep.subr.mxu0 0.0
        %796 = vmatpush2.msra.mxu0 0.0
        %797 = vmatprep.subr.mxu0 0.0
        %798 = vmatpush2.msra.mxu0 0.0
        %799 = vmatprep.subr.mxu0 0.0
        %800 = vmatpush2.msra.mxu0 0.0
        %801 = vmatprep.subr.mxu0 0.0
        %802 = vmatpush2.msra.mxu0 0.0
        %803 = vmatprep.subr.mxu0 0.0
        %804 = vmatpush2.msra.mxu0 0.0
        %805 = vmatprep.subr.mxu0 0.0
        %806 = vmatpush2.msra.mxu0 0.0
        %807 = vmatprep.subr.mxu0 0.0
        %808 = vmatpush2.msra.mxu0 0.0
        %809 = vmatprep.subr.mxu0 0.0
        %810 = vmatpush2.msra.mxu0 0.0
        %811 = vmatprep.subr.mxu0 0.0
        %812 = vmatpush2.msra.mxu0 0.0
        %813 = vmatprep.subr.mxu0 0.0
        %814 = vmatpush2.msra.mxu0 0.0
        %815 = vmatprep.mubr.f32.mxu0 0.0
        %816 = vmatmul.mubr.f32.gmra.mxu0 %v749
        %v817 = vpop.f32.mrf.mxu0
        %v818 = vadd.f32 0.0, %v817
        %v819 = vpop.f32.mrf.mxu0
        %v820 = vadd.f32 0.0, %v819
        %821 = vdwg.mxu0
        %v822 = vlaneseq
        %v823 = vshrl.u32 %v822, 7
        %v824 = vsub.s32 0, %v823
        %v825 = vrot.slane %v668, %v824
        %v826 = vlaneseq
        %v827 = vshrl.u32 %v826, 7
        %v828 = vsub.s32 0, %v827
        %v829 = vrot.slane %v670, %v828
        %v830 = vmul.f32 %v743, %v825
        %v831 = vmul.f32 %v745, %v829
        %v834 = vcombine.low %v830, %v831
        %v836 = vmul.f32 %v498, %v834
        %v839 = vcombine.low %v818, %v820
        %v841 = vadd.f32 %v836, %v839
        %842 = vst [vmem:[%s269] sm:$0xff] %v841
        %s843 = sand.u32 %s175, 1
        %s844 = scalar_lea.sflag [#allocation3], %s843
        %s845 = sand.u32 %s175, 1
        %s846 = smul.addr %s845, 8
        %s847 = scalar_lea.vmem [#allocation2], %s846
        // Predicated region
        $region45: #{tpu_custom_call.1} parent=43 // pred_check
          %p848 = pneg %p185
        $region46: #{tpu_custom_call.1} parent=43 // pred_check_branch
          %850 = sbr.rel (%p848) target = $region48
        $region47: #{tpu_custom_call.1} parent=43 // pred_region
          %s851 = smul.u32 2, %s25
          %s853 = ssub.s32 128, 128
          %854 = vsyncadd %s844, %s853
          %s855 = smul.addr %s24, 2
          %s856 = sadd.s32 %s851, %s855
          %s857 = smul.addr %s856, 64
          %s858 = scalar_lea.hbm %s6, %s857
          %s860 = sshll.u32 %s847, 4
          %s861 = int_to_ptr.vmem [resolvable:$true] %s860
          %863 = dma.vmem_to_hbm [thread:$0]  %s861, 128, %s858, %s844
        $region48: #{tpu_custom_call.1} parent=43 // pred_fallthru
          _
      $region44: #{tpu_custom_call.1} parent=5 // pred_fallthru
        _
      %p864 = scmp.le.s32.totalorder 2, %s15
      // Predicated region
      $region49: #{tpu_custom_call.1} parent=5 // pred_check
        %p865 = pneg %p864
      $region50: #{tpu_custom_call.1} parent=5 // pred_check_branch
        %867 = sbr.rel (%p865) target = $region52
      $region51: #{tpu_custom_call.1} parent=5 // pred_region
        %s868 = ssub.s32 %s15, 2
        // Predicated region
        $region53: #{tpu_custom_call.1} parent=51 // pred_check
          %p869 = pneg %p191
        $region54: #{tpu_custom_call.1} parent=51 // pred_check_branch
          %871 = sbr.rel (%p869) target = $region56
        $region55: #{tpu_custom_call.1} parent=51 // pred_region
          %s872 = sand.u32 %s176, 1
          %s873 = scalar_lea.sflag [#allocation3], %s872
          %s874 = sand.u32 %s176, 1
          %s875 = smul.addr %s874, 8
          %s876 = scalar_lea.vmem [#allocation2], %s875
          %877 = dma.done %s873, 128
        $region56: #{tpu_custom_call.1} parent=51 // pred_fallthru
          _
      $region52: #{tpu_custom_call.1} parent=5 // pred_fallthru
        _
    $region6: #{tpu_custom_call.1} parent=1 // loop_footer
      %s19 = sadd.s32 1, %s15
    $region7: #{tpu_custom_call.1} parent=1 // loop_footer_branch
      %14 = sbr.rel target = $region3
    $region8: #{tpu_custom_call.1} parent=1 // loop_exit
      _
    %878 = vsyncpa [#allocation3], 1
    %s879 = scalar_lea.sflag [#allocation3], 1
    %880 = vsyncpa %s879, 1

</llo_original>
